<compile_context>
chip_gen: v5e
topology: v5e:2x2
jax: 0.10.0
libtpu: 0.0.40
codegen_flags: <defaults>
</compile_context>

<pallas_src>
from dataclasses import dataclass, field

import jax
import jax.numpy as jnp
from jax.experimental import pallas as pl
from jax.experimental.pallas import tpu as pltpu


# ----------------------------- config (mirrors the PyTorch config) -----------
@dataclass
class ModelConfig:
    num_layers: int = 2
    head_num: int = 4
    head_dim: int = 32
    untie_bias: bool = False


@dataclass
class Config:
    model: ModelConfig = field(default_factory=ModelConfig)


# ----------------------------- parameter init (== torch.rand shapes) ---------
def get_bias_parameter(config: Config, key) -> jnp.ndarray:
    if config.model.untie_bias:
        bias_shape = (config.model.num_layers,
                      config.model.head_num,
                      config.model.head_dim)
    else:
        bias_shape = (config.model.head_num, config.model.head_dim)
    # torch.rand == uniform [0, 1)
    return jax.random.uniform(key, bias_shape, dtype=jnp.float32)


def init_transformer_xl_bias(config: Config, key):
    k_w, k_r, k_s = jax.random.split(key, 3)
    return {
        "r_w_bias": get_bias_parameter(config, k_w),
        "r_r_bias": get_bias_parameter(config, k_r),
        "r_s_bias": get_bias_parameter(config, k_s),
    }


# ----------------------------- Pallas kernel ---------------------------------
def _bias_add_kernel(q_ref, rw_ref, rr_ref, rs_ref, ow_ref, or_ref, os_ref):
    # Pure VPU elementwise work: broadcast-add each (1, C) bias row over the
    # row (sublane) axis of the current tile.  Mixed dtypes promote inside
    # the add; the store casts to the (result_type) output dtype.
    q = q_ref[...]
    ow_ref[...] = (q + rw_ref[...]).astype(ow_ref.dtype)
    or_ref[...] = (q + rr_ref[...]).astype(or_ref.dtype)
    os_ref[...] = (q + rs_ref[...]).astype(os_ref.dtype)


def _vmem_limit_bytes():
    try:
        cap = int(pltpu.get_tpu_info().vmem_capacity_bytes)
    except Exception:
        cap = 64 * 1024 * 1024       # conservative fallback (v7x-sized)
    # Stay well under physical VMEM: half the capacity, capped at 48 MiB.
    # (v5e/v6e: 48 MiB of 128 MiB; v7x: 32 MiB of 64 MiB.)
    return int(min(cap // 2, 48 * 1024 * 1024))


def transformer_xl_bias_apply(q, r_w_bias, r_r_bias, r_s_bias, *,
                              layer=None, max_tile_rows=2048,
                              alias_q_to_rw=False):
    """q: [seq, head_num, head_dim]; biases: [H, D] or [num_layers, H, D].

    Returns (q + r_w_bias, q + r_r_bias, q + r_s_bias), each [seq, H, D].
    """
    S, H, D = q.shape
    F = H * D

    def pick_layer(b):
        if b.ndim == 3:          # untie_bias=True: select this layer's bias
            return b[0 if layer is None else layer]
        return b

    biases = [pick_layer(b) for b in (r_w_bias, r_r_bias, r_s_bias)]
    out_dtype = jnp.result_type(q.dtype, *[b.dtype for b in biases])

    # Seq->lane fold for narrow feature widths: view q as (S/8, 8F) so each
    # output row is lane-dense (>= 1024 lanes for the default F=128 config).
    fold = 8 if (S >= 8 and S % 8 == 0 and F <= 512) else 1
    R, C = S // fold, F * fold
    q2 = q.reshape(R, C)                       # free (row-major reshape)

    def prep_bias(b):
        b = b.reshape(1, F)
        if fold > 1:
            b = jnp.tile(b, (1, fold))         # tiny, done once
        return b

    rw, rr, rs = (prep_bias(b) for b in biases)

    # ---- VMEM-aware tile sizing --------------------------------------------
    vmem_limit = _vmem_limit_bytes()
    in_b = jnp.dtype(q.dtype).itemsize
    out_b = jnp.dtype(out_dtype).itemsize
    # (1 input + 3 outputs) streams, double-buffered by the pipeline.
    per_row_bytes = 2 * C * (in_b + 3 * out_b)
    budget = (vmem_limit * 3) // 4             # leave headroom for bias blocks etc.
    tile_rows = max(8, min(max_tile_rows, budget // per_row_bytes))
    tile_rows = (tile_rows // 8) * 8           # sublane-aligned

    if R > 8:
        # Ensure at least 2 grid steps so ("parallel",) shards across both
        # TensorCores on v7x (and costs nothing on single-TC chips).
        half = ((pl.cdiv(R, 2) + 7) // 8) * 8
        tile_rows = min(tile_rows, half)
    else:
        tile_rows = max(R, 1)                  # single full-array block

    grid = (pl.cdiv(R, tile_rows),)            # non-divisible grid is fine:
                                               # boundary blocks are masked.

    q_spec = pl.BlockSpec((tile_rows, C), lambda i: (i, 0))
    bias_spec = pl.BlockSpec((1, C), lambda i: (0, 0))   # VMEM-resident
    out_spec = pl.BlockSpec((tile_rows, C), lambda i: (i, 0))
    out_shape = tuple(jax.ShapeDtypeStruct((R, C), out_dtype) for _ in range(3))

    kwargs = {}
    if alias_q_to_rw and out_dtype == q.dtype:
        kwargs["input_output_aliases"] = {0: 0}

    ow, orr, osb = pl.pallas_call(
        _bias_add_kernel,
        out_shape=out_shape,
        grid=grid,
        in_specs=[q_spec, bias_spec, bias_spec, bias_spec],
        out_specs=[out_spec, out_spec, out_spec],
        compiler_params=pltpu.CompilerParams(
            dimension_semantics=("parallel",),
            vmem_limit_bytes=vmem_limit),
        **kwargs,
    )(q2, rw, rr, rs)

    return tuple(o.reshape(S, H, D) for o in (ow, orr, osb))


# ----------------------------- main -------------------------------------------
if __name__ == "__main__":
    key = jax.random.PRNGKey(0)
    k_params, k_q, k_params_u, k_qu = jax.random.split(key, 4)

    # --- tied biases, seq multiple of 8 (exercises the seq->lane fold) -------
    config = Config()  # head_num=4, head_dim=32, untie_bias=False
    params = init_transformer_xl_bias(config, k_params)
    seq = 8
    q = jax.random.normal(
        k_q, (seq, config.model.head_num, config.model.head_dim),
        dtype=jnp.float32)

    outs = transformer_xl_bias_apply(
        q, params["r_w_bias"], params["r_r_bias"], params["r_s_bias"])
    outs = jax.block_until_ready(outs)

    refs = (q + params["r_w_bias"][None],
            q + params["r_r_bias"][None],
            q + params["r_s_bias"][None])
    for o, r in zip(outs, refs):
        assert o.shape == r.shape, "shape mismatch vs reference"
        assert jnp.allclose(o, r, atol=1e-6), "mismatch vs reference"

    # --- untied biases, odd seq (exercises non-divisible grid + layer select)
    config_u = Config(model=ModelConfig(untie_bias=True))
    params_u = init_transformer_xl_bias(config_u, k_params_u)
    seq_u = 13
    q_u = jax.random.normal(
        k_qu, (seq_u, config_u.model.head_num, config_u.model.head_dim),
        dtype=jnp.float32)

    outs_u = transformer_xl_bias_apply(
        q_u, params_u["r_w_bias"], params_u["r_r_bias"], params_u["r_s_bias"],
        layer=1)
    outs_u = jax.block_until_ready(outs_u)

    refs_u = (q_u + params_u["r_w_bias"][1][None],
              q_u + params_u["r_r_bias"][1][None],
              q_u + params_u["r_s_bias"][1][None])
    for o, r in zip(outs_u, refs_u):
        assert o.shape == r.shape, "shape mismatch vs reference (untied)"
        assert jnp.allclose(o, r, atol=1e-6), "mismatch vs reference (untied)"

    print("KERNEL_OK")
</pallas_src>

<mosaic_0001>
module attributes {stable_mosaic.version = 11 : i64} {
  func.func @_bias_add_kernel(%arg0: i32, %arg1: memref<1x1024xf32, #tpu.memory_space<vmem>>, %arg2: memref<1x1024xf32, #tpu.memory_space<vmem>>, %arg3: memref<1x1024xf32, #tpu.memory_space<vmem>>, %arg4: memref<1x1024xf32, #tpu.memory_space<vmem>>, %arg5: memref<1x1024xf32, #tpu.memory_space<vmem>>, %arg6: memref<1x1024xf32, #tpu.memory_space<vmem>>, %arg7: memref<1x1024xf32, #tpu.memory_space<vmem>>) attributes {dimension_semantics = [#tpu.dimension_semantics<parallel>], iteration_bounds = array<i64: 1>, scalar_prefetch = 0 : i64, scratch_operands = 0 : i64, tpu.core_type = #tpu.core_type<tc>, window_params = [{transform_indices = @transform_0, window_bounds = array<i64: 1, 1024>}, {pipeline_mode = #tpu.pipeline_mode<synchronous>, transform_indices = @transform_1, window_bounds = array<i64: 1, 1024>}, {pipeline_mode = #tpu.pipeline_mode<synchronous>, transform_indices = @transform_2, window_bounds = array<i64: 1, 1024>}, {pipeline_mode = #tpu.pipeline_mode<synchronous>, transform_indices = @transform_3, window_bounds = array<i64: 1, 1024>}, {transform_indices = @transform_4, window_bounds = array<i64: 1, 1024>}, {transform_indices = @transform_5, window_bounds = array<i64: 1, 1024>}, {transform_indices = @transform_6, window_bounds = array<i64: 1, 1024>}]} {
    %c0 = arith.constant 0 : index
    %c0_0 = arith.constant 0 : index
    %0 = vector.load %arg1[%c0, %c0_0] : memref<1x1024xf32, #tpu.memory_space<vmem>>, vector<1x1024xf32>
    %c0_1 = arith.constant 0 : index
    %c0_2 = arith.constant 0 : index
    %1 = vector.load %arg2[%c0_1, %c0_2] : memref<1x1024xf32, #tpu.memory_space<vmem>>, vector<1x1024xf32>
    %2 = arith.addf %0, %1 : vector<1x1024xf32>
    %c0_3 = arith.constant 0 : index
    %c0_4 = arith.constant 0 : index
    %3 = vector.load %arg5[%c0_3, %c0_4] : memref<1x1024xf32, #tpu.memory_space<vmem>>, vector<1x1024xf32>
    tpu.vector_store %arg5[%c0_3, %c0_4], %2 {strides = array<i32>} : memref<1x1024xf32, #tpu.memory_space<vmem>>, vector<1x1024xf32>,
    %c0_5 = arith.constant 0 : index
    %c0_6 = arith.constant 0 : index
    %4 = vector.load %arg3[%c0_5, %c0_6] : memref<1x1024xf32, #tpu.memory_space<vmem>>, vector<1x1024xf32>
    %5 = arith.addf %0, %4 : vector<1x1024xf32>
    %c0_7 = arith.constant 0 : index
    %c0_8 = arith.constant 0 : index
    %6 = vector.load %arg6[%c0_7, %c0_8] : memref<1x1024xf32, #tpu.memory_space<vmem>>, vector<1x1024xf32>
    tpu.vector_store %arg6[%c0_7, %c0_8], %5 {strides = array<i32>} : memref<1x1024xf32, #tpu.memory_space<vmem>>, vector<1x1024xf32>,
    %c0_9 = arith.constant 0 : index
    %c0_10 = arith.constant 0 : index
    %7 = vector.load %arg4[%c0_9, %c0_10] : memref<1x1024xf32, #tpu.memory_space<vmem>>, vector<1x1024xf32>
    %8 = arith.addf %0, %7 : vector<1x1024xf32>
    %c0_11 = arith.constant 0 : index
    %c0_12 = arith.constant 0 : index
    %9 = vector.load %arg7[%c0_11, %c0_12] : memref<1x1024xf32, #tpu.memory_space<vmem>>, vector<1x1024xf32>
    tpu.vector_store %arg7[%c0_11, %c0_12], %8 {strides = array<i32>} : memref<1x1024xf32, #tpu.memory_space<vmem>>, vector<1x1024xf32>,
    return
  }
  func.func @transform_0(%arg0: i32) -> (i32, i32) {
    %c0_i32 = arith.constant 0 : i32
    %c0_i32_0 = arith.constant 0 : i32
    return %arg0, %c0_i32 : i32, i32
  }
  func.func @transform_1(%arg0: i32) -> (i32, i32) {
    %c0_i32 = arith.constant 0 : i32
    %c0_i32_0 = arith.constant 0 : i32
    %c0_i32_1 = arith.constant 0 : i32
    return %c0_i32, %c0_i32_0 : i32, i32
  }
  func.func @transform_2(%arg0: i32) -> (i32, i32) {
    %c0_i32 = arith.constant 0 : i32
    %c0_i32_0 = arith.constant 0 : i32
    %c0_i32_1 = arith.constant 0 : i32
    return %c0_i32, %c0_i32_0 : i32, i32
  }
  func.func @transform_3(%arg0: i32) -> (i32, i32) {
    %c0_i32 = arith.constant 0 : i32
    %c0_i32_0 = arith.constant 0 : i32
    %c0_i32_1 = arith.constant 0 : i32
    return %c0_i32, %c0_i32_0 : i32, i32
  }
  func.func @transform_4(%arg0: i32) -> (i32, i32) {
    %c0_i32 = arith.constant 0 : i32
    %c0_i32_0 = arith.constant 0 : i32
    return %arg0, %c0_i32 : i32, i32
  }
  func.func @transform_5(%arg0: i32) -> (i32, i32) {
    %c0_i32 = arith.constant 0 : i32
    %c0_i32_0 = arith.constant 0 : i32
    return %arg0, %c0_i32 : i32, i32
  }
  func.func @transform_6(%arg0: i32) -> (i32, i32) {
    %c0_i32 = arith.constant 0 : i32
    %c0_i32_0 = arith.constant 0 : i32
    return %arg0, %c0_i32 : i32, i32
  }
}

</mosaic_0001>

<llo_original>
// kernel: tpu_custom_call.1
$region0: #{tpu_custom_call.1}
  #allocation0 [shape = 'u32[]', space=smem, size = 0x4, offset = 0x4, fixed_abs, tag = 'smem constant byte address 0x4 - core index']
  #allocation1 [shape = 'u32[72,128]{1,0:T(1,128)}', space=vmem, size = 0x9000, scoped, tag = 'internal scratch']
  %s0 = inlined_call_operand.hbm [shape: f32[1,1024], index: 0, kind: input, shape index: {}]
  %s1 = inlined_call_operand.hbm [shape: f32[1,1024], index: 1, kind: input, shape index: {}]
  %s2 = inlined_call_operand.hbm [shape: f32[1,1024], index: 2, kind: input, shape index: {}]
  %s3 = inlined_call_operand.hbm [shape: f32[1,1024], index: 3, kind: input, shape index: {}]
  %s4 = inlined_call_operand.hbm [shape: f32[1,1024], index: 4, kind: output, shape index: {0}]
  %s5 = inlined_call_operand.hbm [shape: f32[1,1024], index: 5, kind: output, shape index: {1}]
  %s6 = inlined_call_operand.hbm [shape: f32[1,1024], index: 6, kind: output, shape index: {2}]
  %7 = xla_tuple %s4, %s5, %s6
  %s8 = sld [smem:[#allocation0]]
  $region58: #{tpu_custom_call.1} parent=0
    _
  %s10 = ssub.s32 1, %s8
  %s11 = scalar_select 0, %s10, %s8
  $region1: #{tpu_custom_call.1} parent=0
    #allocation2 [shape = 'u8[4096]{0}', space=vmem, size = 0x1000, scoped, tag = 'input window, operand 0, single buffered']
    #allocation3 [shape = 's32[1]{0}', space=sflag, size = 0x4, scoped, tag = 'scoped memory for tpu_custom_call.1']
    #allocation4 [shape = 's32[1]{0}', space=sflag, size = 0x4, scoped, tag = 'scoped memory for tpu_custom_call.1']
    #allocation5 [shape = 'u8[4096]{0}', space=vmem, size = 0x1000, scoped, tag = 'input window, operand 1, single buffered']
    #allocation6 [shape = 's32[1]{0}', space=sflag, size = 0x4, scoped, tag = 'scoped memory for tpu_custom_call.1']
    #allocation7 [shape = 'u8[4096]{0}', space=vmem, size = 0x1000, scoped, tag = 'input window, operand 2, single buffered']
    #allocation8 [shape = 'u8[4096]{0}', space=vmem, size = 0x1000, scoped, tag = 'input window, operand 3, single buffered']
    #allocation9 [shape = 's32[1]{0}', space=sflag, size = 0x4, scoped, tag = 'scoped memory for tpu_custom_call.1']
    #allocation10 [shape = 'u8[4096]{0}', space=vmem, size = 0x1000, scoped, tag = 'output window, operand 0, single buffered']
    #allocation11 [shape = 'u8[4096]{0}', space=vmem, size = 0x1000, scoped, tag = 'output window, operand 1, single buffered']
    #allocation12 [shape = 's32[1]{0}', space=sflag, size = 0x4, scoped, tag = 'scoped memory for tpu_custom_call.1']
    #allocation13 [shape = 'u8[4096]{0}', space=vmem, size = 0x1000, scoped, tag = 'output window, operand 2, single buffered']
    %12 = vsyncpa [#allocation3], 0
    %13 = vsyncpa [#allocation6], 0
    %14 = vsyncpa [#allocation9], 0
    %15 = vsyncpa [#allocation4], 0
    %16 = vsyncpa [#allocation12], 0
    // Predicated region
    $region2: #{tpu_custom_call.1} parent=1 // pred_check
      _
    $region3: #{tpu_custom_call.1} parent=1 // pred_check_branch
      %18 = sbr.rel (0) target = $region5
    $region4: #{tpu_custom_call.1} parent=1 // pred_region
      %20 = vsyncadd [#allocation3], 0
      %s22 = sshll.u32 %s0, 4
      %s23 = int_to_ptr.hbm [resolvable:$true] %s22
      %s24 = sshll.u32 [#allocation2], 4
      %s25 = int_to_ptr.vmem [resolvable:$true] %s24
      %27 = dma.hbm_to_vmem [thread:$0]  %s23, 128, %s25, [#allocation3]
    $region5: #{tpu_custom_call.1} parent=1 // pred_fallthru
      _
    // Predicated region
    $region6: #{tpu_custom_call.1} parent=1 // pred_check
      _
    $region7: #{tpu_custom_call.1} parent=1 // pred_check_branch
      %29 = sbr.rel (0) target = $region9
    $region8: #{tpu_custom_call.1} parent=1 // pred_region
      %31 = vsyncadd [#allocation6], 0
      %s33 = sshll.u32 %s1, 4
      %s34 = int_to_ptr.hbm [resolvable:$true] %s33
      %s35 = sshll.u32 [#allocation5], 4
      %s36 = int_to_ptr.vmem [resolvable:$true] %s35
      %38 = dma.hbm_to_vmem [thread:$0]  %s34, 128, %s36, [#allocation6]
    $region9: #{tpu_custom_call.1} parent=1 // pred_fallthru
      _
    // Predicated region
    $region10: #{tpu_custom_call.1} parent=1 // pred_check
      _
    $region11: #{tpu_custom_call.1} parent=1 // pred_check_branch
      %40 = sbr.rel (0) target = $region13
    $region12: #{tpu_custom_call.1} parent=1 // pred_region
      %42 = vsyncadd [#allocation6], 0
      %s44 = sshll.u32 %s2, 4
      %s45 = int_to_ptr.hbm [resolvable:$true] %s44
      %s46 = sshll.u32 [#allocation7], 4
      %s47 = int_to_ptr.vmem [resolvable:$true] %s46
      %49 = dma.hbm_to_vmem [thread:$0]  %s45, 128, %s47, [#allocation6]
    $region13: #{tpu_custom_call.1} parent=1 // pred_fallthru
      _
    // Predicated region
    $region14: #{tpu_custom_call.1} parent=1 // pred_check
      _
    $region15: #{tpu_custom_call.1} parent=1 // pred_check_branch
      %51 = sbr.rel (0) target = $region17
    $region16: #{tpu_custom_call.1} parent=1 // pred_region
      %53 = vsyncadd [#allocation9], 0
      %s55 = sshll.u32 %s3, 4
      %s56 = int_to_ptr.hbm [resolvable:$true] %s55
      %s57 = sshll.u32 [#allocation8], 4
      %s58 = int_to_ptr.vmem [resolvable:$true] %s57
      %60 = dma.hbm_to_vmem [thread:$0]  %s56, 128, %s58, [#allocation9]
    $region17: #{tpu_custom_call.1} parent=1 // pred_fallthru
      _
    // Predicated region
    $region18: #{tpu_custom_call.1} parent=1 // pred_check
      _
    $region19: #{tpu_custom_call.1} parent=1 // pred_check_branch
      %62 = sbr.rel (0) target = $region21
    $region20: #{tpu_custom_call.1} parent=1 // pred_region
      %64 = dma.done [#allocation3], 128
    $region21: #{tpu_custom_call.1} parent=1 // pred_fallthru
      _
    // Predicated region
    $region22: #{tpu_custom_call.1} parent=1 // pred_check
      _
    $region23: #{tpu_custom_call.1} parent=1 // pred_check_branch
      %66 = sbr.rel (0) target = $region25
    $region24: #{tpu_custom_call.1} parent=1 // pred_region
      %68 = dma.done [#allocation6], 128
    $region25: #{tpu_custom_call.1} parent=1 // pred_fallthru
      _
    // Predicated region
    $region26: #{tpu_custom_call.1} parent=1 // pred_check
      _
    $region27: #{tpu_custom_call.1} parent=1 // pred_check_branch
      %70 = sbr.rel (0) target = $region29
    $region28: #{tpu_custom_call.1} parent=1 // pred_region
      %72 = dma.done [#allocation6], 128
    $region29: #{tpu_custom_call.1} parent=1 // pred_fallthru
      _
    // Predicated region
    $region30: #{tpu_custom_call.1} parent=1 // pred_check
      _
    $region31: #{tpu_custom_call.1} parent=1 // pred_check_branch
      %74 = sbr.rel (0) target = $region33
    $region32: #{tpu_custom_call.1} parent=1 // pred_region
      %76 = dma.done [#allocation9], 128
    $region33: #{tpu_custom_call.1} parent=1 // pred_fallthru
      _
    %v77 = vld [vmem:[#allocation2] sm:$0xff]
    %v78 = vld [vmem:[#allocation5] sm:$0xff]
    %v79 = vadd.f32 %v77, %v78
    %80 = vst [vmem:[#allocation10] sm:$0xff] %v79
    %v81 = vld [vmem:[#allocation7] sm:$0xff]
    %v82 = vadd.f32 %v77, %v81
    %83 = vst [vmem:[#allocation11] sm:$0xff] %v82
    %v84 = vld [vmem:[#allocation8] sm:$0xff]
    %v85 = vadd.f32 %v77, %v84
    %86 = vst [vmem:[#allocation13] sm:$0xff] %v85
    // Predicated region
    $region34: #{tpu_custom_call.1} parent=1 // pred_check
      _
    $region35: #{tpu_custom_call.1} parent=1 // pred_check_branch
      %88 = sbr.rel (0) target = $region37
    $region36: #{tpu_custom_call.1} parent=1 // pred_region
      %90 = vsyncadd [#allocation4], 0
      %s92 = sshll.u32 [#allocation10], 4
      %s93 = int_to_ptr.vmem [resolvable:$true] %s92
      %s94 = sshll.u32 %s4, 4
      %s95 = int_to_ptr.hbm [resolvable:$true] %s94
      %97 = dma.vmem_to_hbm [thread:$0]  %s93, 128, %s95, [#allocation4]
    $region37: #{tpu_custom_call.1} parent=1 // pred_fallthru
      _
    // Predicated region
    $region38: #{tpu_custom_call.1} parent=1 // pred_check
      _
    $region39: #{tpu_custom_call.1} parent=1 // pred_check_branch
      %99 = sbr.rel (0) target = $region41
    $region40: #{tpu_custom_call.1} parent=1 // pred_region
      %101 = vsyncadd [#allocation12], 0
      %s103 = sshll.u32 [#allocation11], 4
      %s104 = int_to_ptr.vmem [resolvable:$true] %s103
      %s105 = sshll.u32 %s5, 4
      %s106 = int_to_ptr.hbm [resolvable:$true] %s105
      %108 = dma.vmem_to_hbm [thread:$0]  %s104, 128, %s106, [#allocation12]
    $region41: #{tpu_custom_call.1} parent=1 // pred_fallthru
      _
    // Predicated region
    $region42: #{tpu_custom_call.1} parent=1 // pred_check
      _
    $region43: #{tpu_custom_call.1} parent=1 // pred_check_branch
      %110 = sbr.rel (0) target = $region45
    $region44: #{tpu_custom_call.1} parent=1 // pred_region
      %112 = vsyncadd [#allocation12], 0
      %s114 = sshll.u32 [#allocation13], 4
      %s115 = int_to_ptr.vmem [resolvable:$true] %s114
      %s116 = sshll.u32 %s6, 4
      %s117 = int_to_ptr.hbm [resolvable:$true] %s116
      %119 = dma.vmem_to_hbm [thread:$0]  %s115, 128, %s117, [#allocation12]
    $region45: #{tpu_custom_call.1} parent=1 // pred_fallthru
      _
    // Predicated region
    $region46: #{tpu_custom_call.1} parent=1 // pred_check
      _
    $region47: #{tpu_custom_call.1} parent=1 // pred_check_branch
      %121 = sbr.rel (0) target = $region49
    $region48: #{tpu_custom_call.1} parent=1 // pred_region
      %123 = dma.done [#allocation4], 128
    $region49: #{tpu_custom_call.1} parent=1 // pred_fallthru
      _
    // Predicated region
    $region50: #{tpu_custom_call.1} parent=1 // pred_check
      _
    $region51: #{tpu_custom_call.1} parent=1 // pred_check_branch
      %125 = sbr.rel (0) target = $region53
    $region52: #{tpu_custom_call.1} parent=1 // pred_region
      %127 = dma.done [#allocation12], 128
    $region53: #{tpu_custom_call.1} parent=1 // pred_fallthru
      _
    // Predicated region
    $region54: #{tpu_custom_call.1} parent=1 // pred_check
      _
    $region55: #{tpu_custom_call.1} parent=1 // pred_check_branch
      %129 = sbr.rel (0) target = $region57
    $region56: #{tpu_custom_call.1} parent=1 // pred_region
      %131 = dma.done [#allocation12], 128
    $region57: #{tpu_custom_call.1} parent=1 // pred_fallthru
      _
    %132 = vsyncpa [#allocation3], 1
    %133 = vsyncpa [#allocation6], 1
    %134 = vsyncpa [#allocation9], 1
    %135 = vsyncpa [#allocation4], 1
    %136 = vsyncpa [#allocation12], 1

</llo_original>
